<compile_context>
chip_gen: v5e
topology: v5e:2x2
jax: 0.10.0
libtpu: 0.0.40
codegen_flags: <defaults>
</compile_context>

<pallas_src>
import jax
import jax.numpy as jnp
from jax.experimental import pallas as pl
from jax.experimental.pallas import tpu as pltpu


def _round_up(n: int, m: int) -> int:
    return ((n + m - 1) // m) * m


def critic_kernel(x_ref, w1_ref, b1_ref, w2_ref, b2_ref, o_ref):
    # ---- Layer 1 (packed): (TR, P*K) @ (P*K, P*H3) on the MXU, f32 acc. ----
    w1 = w1_ref[...]
    x = x_ref[...].astype(w1.dtype)                    # bf16 (or f32) operands
    h = jnp.dot(x, w1, preferred_element_type=jnp.float32)
    h = jnp.maximum(h + b1_ref[...], 0.0)              # bias + ReLU on the VPU

    # ---- Layer 2 (packed): block-diagonal (P*H3, P) weight -> (TR, P). ----
    w2 = w2_ref[...]
    v = jnp.dot(h.astype(w2.dtype), w2, preferred_element_type=jnp.float32)

    # b2 is a single scalar living in SMEM.
    o_ref[...] = (v + b2_ref[0]).astype(o_ref.dtype)


def critic_forward(x, w1, b1, w2, b2, *, block_b: int = 4096,
                   compute_dtype=jnp.bfloat16):
    """x: (B, n_states) f32 -> (B, 1) f32.

    Weights are in (in_features, out_features) layout, i.e. the forward is
    `relu(x @ w1 + b1) @ w2 + b2`, equivalent to the PyTorch module.
    `compute_dtype` controls the MXU operand dtype (accumulation is always f32).
    """
    B, K = x.shape
    H3 = w1.shape[1]

    # --- Sample packing factor along the 128-lane contraction dim. ---
    P = max(1, 128 // K)

    # Pad B to a multiple of P so the packing reshape stays a free, contiguous
    # reshape.  This (small) pad only triggers when B % P != 0; TB-divisibility
    # of the grid is handled by Pallas' masked last block, not by padding.
    B_p = _round_up(B, P)
    if B_p != B:
        x = jnp.pad(x, ((0, B_p - B), (0, 0)))
    R = B_p // P
    x_packed = x.reshape(R, P * K)                      # no data movement

    # --- Block-diagonal replicated weights, built once at trace time. ---
    eye = jnp.eye(P, dtype=w1.dtype)
    w1_p = jnp.kron(eye, w1).astype(compute_dtype)                 # (P*K, P*H3)
    b1_p = jnp.tile(b1.reshape(1, H3), (1, P)).astype(jnp.float32)  # (1, P*H3)
    w2_p = jnp.kron(eye, w2.reshape(H3, 1)).astype(compute_dtype)   # (P*H3, P)
    b2_s = b2.reshape(1).astype(jnp.float32)                        # SMEM scalar

    # --- Batch tiling, expressed in packed rows (1 row == P samples). ---
    TR_cap = max(8, _round_up(block_b, 8 * P) // P)
    if R <= TR_cap:
        if B > 1024 and R >= 16:
            # v7x has 2 TensorCores: make sure the "parallel" grid has >= 2 steps.
            TR = _round_up(pl.cdiv(R, 2), 8)
        else:
            TR = R                                    # single full-array block
    else:
        TR = TR_cap                                   # multiple of 8 sublanes
    grid = (pl.cdiv(R, TR),)

    bytes_accessed = (x_packed.size * x_packed.dtype.itemsize
                      + w1_p.size * w1_p.dtype.itemsize
                      + b1_p.size * 4
                      + w2_p.size * w2_p.dtype.itemsize
                      + R * P * 4)
    cost = pl.CostEstimate(flops=2 * B_p * K * H3 + 2 * B_p * H3,
                           transcendentals=0,
                           bytes_accessed=bytes_accessed)

    out = pl.pallas_call(
        critic_kernel,
        out_shape=jax.ShapeDtypeStruct((R, P), jnp.float32),
        grid=grid,
        in_specs=[
            # x: one lane-dense (TR, P*K) tile per grid step (double-buffered).
            pl.BlockSpec((TR, P * K), lambda i: (i, 0)),
            # Weights / b1: constant block index -> resident in VMEM, one fetch.
            pl.BlockSpec((P * K, P * H3), lambda i: (0, 0)),
            pl.BlockSpec((1, P * H3), lambda i: (0, 0)),
            pl.BlockSpec((P * H3, P), lambda i: (0, 0)),
            # b2: single scalar in SMEM (no padded VMEM tile, no extra DMA).
            pl.BlockSpec(memory_space=pltpu.MemorySpace.SMEM),
        ],
        out_specs=pl.BlockSpec((TR, P), lambda i: (i, 0)),
        compiler_params=pltpu.CompilerParams(
            # Batch tiles are independent -> shard across TensorCores (v7x).
            dimension_semantics=("parallel",),
        ),
        cost_estimate=cost,
    )(x_packed, w1_p, b1_p, w2_p, b2_s)

    # (R, P) -> (B_p, 1); padded rows computed garbage but are sliced off here.
    return out.reshape(B_p, 1)[:B]


def init_critic_params(key, n_states, hidden_dim, dtype=jnp.float32):
    """Deterministic init mirroring PyTorch Linear default U(-1/sqrt(fan_in), +)."""
    h3 = hidden_dim * 3
    k1, k2, k3, k4 = jax.random.split(key, 4)
    bound1 = 1.0 / jnp.sqrt(jnp.array(n_states, dtype))
    bound2 = 1.0 / jnp.sqrt(jnp.array(h3, dtype))
    w1 = jax.random.uniform(k1, (n_states, h3), dtype, -bound1, bound1)
    b1 = jax.random.uniform(k2, (1, h3), dtype, -bound1, bound1)
    w2 = jax.random.uniform(k3, (h3, 1), dtype, -bound2, bound2)
    b2 = jax.random.uniform(k4, (1, 1), dtype, -bound2, bound2)
    return w1, b1, w2, b2


def critic_reference(x, w1, b1, w2, b2):
    h = jnp.maximum(x @ w1 + b1, 0.0)
    return h @ w2 + b2


if __name__ == "__main__":
    n_states = 16
    hidden_dim = 32          # hidden layer width = hidden_dim * 3 = 96

    key = jax.random.PRNGKey(0)
    k_p, k_x1, k_x2, k_x3, k_x4 = jax.random.split(key, 5)
    w1, b1, w2, b2 = init_critic_params(k_p, n_states, hidden_dim)

    # --- 1) small batch, f32 MXU operands: tight check vs. reference ---
    x = jax.random.normal(k_x1, (8, n_states), jnp.float32)
    out = jax.block_until_ready(
        critic_forward(x, w1, b1, w2, b2, compute_dtype=jnp.float32))
    ref = critic_reference(x, w1, b1, w2, b2)
    assert out.shape == (8, 1), out.shape
    assert jnp.allclose(out, ref, atol=1e-4, rtol=1e-4)

    # --- 2) default bf16 operands, non-multiple-of-8 batch (tiny pad path) ---
    x2 = jax.random.normal(k_x2, (300, n_states), jnp.float32)
    out2 = jax.block_until_ready(critic_forward(x2, w1, b1, w2, b2))
    ref2 = critic_reference(x2, w1, b1, w2, b2)
    assert out2.shape == (300, 1), out2.shape
    assert jnp.allclose(out2, ref2, atol=3e-2, rtol=3e-2)   # bf16 operands

    # --- 3) moderate batch: grid split into 2 "parallel" steps (v7x path) ---
    x3 = jax.random.normal(k_x3, (2560, n_states), jnp.float32)
    out3 = jax.block_until_ready(critic_forward(x3, w1, b1, w2, b2))
    ref3 = critic_reference(x3, w1, b1, w2, b2)
    assert out3.shape == (2560, 1), out3.shape
    assert jnp.allclose(out3, ref3, atol=3e-2, rtol=3e-2)

    # --- 4) multi-step grid with a masked (non-divisible) last block ---
    x4 = jax.random.normal(k_x4, (2560, n_states), jnp.float32)
    out4 = jax.block_until_ready(
        critic_forward(x4, w1, b1, w2, b2, block_b=1024))
    ref4 = critic_reference(x4, w1, b1, w2, b2)
    assert out4.shape == (2560, 1), out4.shape
    assert jnp.allclose(out4, ref4, atol=3e-2, rtol=3e-2)

    print("KERNEL_OK")
</pallas_src>

<mosaic_0001>
module attributes {stable_mosaic.version = 11 : i64} {
  func.func @critic_kernel(%arg0: i32, %arg1: memref<1x128xf32, #tpu.memory_space<vmem>>, %arg2: memref<128x768xf32, #tpu.memory_space<vmem>>, %arg3: memref<1x768xf32, #tpu.memory_space<vmem>>, %arg4: memref<768x8xf32, #tpu.memory_space<vmem>>, %arg5: memref<1xf32, #tpu.memory_space<smem>>, %arg6: memref<1x8xf32, #tpu.memory_space<vmem>>) attributes {dimension_semantics = [#tpu.dimension_semantics<parallel>], iteration_bounds = array<i64: 1>, scalar_prefetch = 0 : i64, scratch_operands = 0 : i64, tpu.core_type = #tpu.core_type<tc>, window_params = [{transform_indices = @transform_0, window_bounds = array<i64: 1, 128>}, {pipeline_mode = #tpu.pipeline_mode<synchronous>, transform_indices = @transform_1, window_bounds = array<i64: 128, 768>}, {pipeline_mode = #tpu.pipeline_mode<synchronous>, transform_indices = @transform_2, window_bounds = array<i64: 1, 768>}, {pipeline_mode = #tpu.pipeline_mode<synchronous>, transform_indices = @transform_3, window_bounds = array<i64: 768, 8>}, {transform_indices = @transform_4, window_bounds = array<i64: 1>}, {transform_indices = @transform_5, window_bounds = array<i64: 1, 8>}]} {
    %c0 = arith.constant 0 : index
    %c0_0 = arith.constant 0 : index
    %0 = vector.load %arg2[%c0, %c0_0] : memref<128x768xf32, #tpu.memory_space<vmem>>, vector<128x768xf32>
    %c0_1 = arith.constant 0 : index
    %c0_2 = arith.constant 0 : index
    %1 = vector.load %arg1[%c0_1, %c0_2] : memref<1x128xf32, #tpu.memory_space<vmem>>, vector<1x128xf32>
    %cst = arith.constant dense<0.000000e+00> : vector<1x768xf32>
    %2 = tpu.matmul %1, %0, %cst {dimension_numbers = #tpu.dot_dimension_numbers<[1], [0], [0], [1], [0, 0, 1, 1], [], []>} : vector<1x128xf32>, vector<128x768xf32>, vector<1x768xf32> -> vector<1x768xf32>
    %c0_3 = arith.constant 0 : index
    %c0_4 = arith.constant 0 : index
    %3 = vector.load %arg3[%c0_3, %c0_4] : memref<1x768xf32, #tpu.memory_space<vmem>>, vector<1x768xf32>
    %4 = arith.addf %2, %3 : vector<1x768xf32>
    %cst_5 = arith.constant 0.000000e+00 : f32
    %5 = vector.broadcast %cst_5 : f32 to vector<1x768xf32>
    %6 = arith.maximumf %4, %5 : vector<1x768xf32>
    %c0_6 = arith.constant 0 : index
    %c0_7 = arith.constant 0 : index
    %7 = vector.load %arg4[%c0_6, %c0_7] : memref<768x8xf32, #tpu.memory_space<vmem>>, vector<768x8xf32>
    %cst_8 = arith.constant dense<0.000000e+00> : vector<1x8xf32>
    %8 = tpu.matmul %6, %7, %cst_8 {dimension_numbers = #tpu.dot_dimension_numbers<[1], [0], [0], [1], [0, 0, 1, 1], [], []>} : vector<1x768xf32>, vector<768x8xf32>, vector<1x8xf32> -> vector<1x8xf32>
    %c0_9 = arith.constant 0 : index
    %9 = memref.load %arg5[%c0_9] : memref<1xf32, #tpu.memory_space<smem>>
    %10 = vector.broadcast %9 : f32 to vector<1x8xf32>
    %11 = arith.addf %8, %10 : vector<1x8xf32>
    %c0_10 = arith.constant 0 : index
    %c0_11 = arith.constant 0 : index
    %12 = vector.load %arg6[%c0_10, %c0_11] : memref<1x8xf32, #tpu.memory_space<vmem>>, vector<1x8xf32>
    tpu.vector_store %arg6[%c0_10, %c0_11], %11 {strides = array<i32>} : memref<1x8xf32, #tpu.memory_space<vmem>>, vector<1x8xf32>,
    return
  }
  func.func @transform_0(%arg0: i32) -> (i32, i32) {
    %c0_i32 = arith.constant 0 : i32
    %c0_i32_0 = arith.constant 0 : i32
    return %arg0, %c0_i32 : i32, i32
  }
  func.func @transform_1(%arg0: i32) -> (i32, i32) {
    %c0_i32 = arith.constant 0 : i32
    %c0_i32_0 = arith.constant 0 : i32
    %c0_i32_1 = arith.constant 0 : i32
    return %c0_i32, %c0_i32_0 : i32, i32
  }
  func.func @transform_2(%arg0: i32) -> (i32, i32) {
    %c0_i32 = arith.constant 0 : i32
    %c0_i32_0 = arith.constant 0 : i32
    %c0_i32_1 = arith.constant 0 : i32
    return %c0_i32, %c0_i32_0 : i32, i32
  }
  func.func @transform_3(%arg0: i32) -> (i32, i32) {
    %c0_i32 = arith.constant 0 : i32
    %c0_i32_0 = arith.constant 0 : i32
    %c0_i32_1 = arith.constant 0 : i32
    return %c0_i32, %c0_i32_0 : i32, i32
  }
  func.func @transform_4(%arg0: i32) -> i32 {
    %c0_i32 = arith.constant 0 : i32
    %c0_i32_0 = arith.constant 0 : i32
    return %c0_i32 : i32
  }
  func.func @transform_5(%arg0: i32) -> (i32, i32) {
    %c0_i32 = arith.constant 0 : i32
    %c0_i32_0 = arith.constant 0 : i32
    return %arg0, %c0_i32 : i32, i32
  }
}

</mosaic_0001>

<llo_original>
// kernel: tpu_custom_call.1
$region0: #{tpu_custom_call.1}
  #allocation0 [shape = 'u32[]', space=smem, size = 0x4, offset = 0x4, fixed_abs, tag = 'smem constant byte address 0x4 - core index']
  #allocation1 [shape = 'u32[72,128]{1,0:T(1,128)}', space=vmem, size = 0x9000, scoped, tag = 'internal scratch']
  #allocation2 [shape = 'f32[1]{0:T(128)S(6)}', space=smem, size = 0x200, scoped, tag = 'scoped memory for tpu_custom_call.1']
  %s0 = inlined_call_operand.vmem [shape: f32[1,128], index: 0, kind: input, shape index: {}]
  %s1 = inlined_call_operand.vmem [shape: f32[128,768], index: 1, kind: input, shape index: {}]
  %s2 = inlined_call_operand.vmem [shape: f32[1,768], index: 2, kind: input, shape index: {}]
  %s3 = inlined_call_operand.vmem [shape: f32[768,8], index: 3, kind: input, shape index: {}]
  %s4 = inlined_call_operand.<no memory space> [shape: f32[1], index: 4, kind: input, shape index: {}]
  %s5 = inlined_call_operand.hbm [shape: f32[1,8], index: 5, kind: output, shape index: {}]
  %s6 = sld [smem:[#allocation0]]
  $region30: #{tpu_custom_call.1} parent=0
    _
  %s8 = ssub.s32 1, %s6
  %s9 = scalar_select 0, %s8, %s6
  %10 = sst [smem:[#allocation2]] %s4
  $region1: #{tpu_custom_call.1} parent=0
    #allocation3 [shape = 'u8[512]{0}', space=vmem, size = 0x400, scoped, tag = 'output window, operand 0, single buffered']
    #allocation4 [shape = 's32[1]{0}', space=sflag, size = 0x4, scoped, tag = 'scoped memory for tpu_custom_call.1']
    %11 = vsyncpa [#allocation4], 0
    // Predicated region
    $region2: #{tpu_custom_call.1} parent=1 // pred_check
      _
    $region3: #{tpu_custom_call.1} parent=1 // pred_check_branch
      %13 = sbr.rel (0) target = $region5
    $region4: #{tpu_custom_call.1} parent=1 // pred_region
      _
    $region5: #{tpu_custom_call.1} parent=1 // pred_fallthru
      _
    // Predicated region
    $region6: #{tpu_custom_call.1} parent=1 // pred_check
      _
    $region7: #{tpu_custom_call.1} parent=1 // pred_check_branch
      %15 = sbr.rel (0) target = $region9
    $region8: #{tpu_custom_call.1} parent=1 // pred_region
      _
    $region9: #{tpu_custom_call.1} parent=1 // pred_fallthru
      _
    // Predicated region
    $region10: #{tpu_custom_call.1} parent=1 // pred_check
      _
    $region11: #{tpu_custom_call.1} parent=1 // pred_check_branch
      %17 = sbr.rel (0) target = $region13
    $region12: #{tpu_custom_call.1} parent=1 // pred_region
      _
    $region13: #{tpu_custom_call.1} parent=1 // pred_fallthru
      _
    // Predicated region
    $region14: #{tpu_custom_call.1} parent=1 // pred_check
      _
    $region15: #{tpu_custom_call.1} parent=1 // pred_check_branch
      %19 = sbr.rel (0) target = $region17
    $region16: #{tpu_custom_call.1} parent=1 // pred_region
      _
    $region17: #{tpu_custom_call.1} parent=1 // pred_fallthru
      _
    // Predicated region
    $region18: #{tpu_custom_call.1} parent=1 // pred_check
      _
    $region19: #{tpu_custom_call.1} parent=1 // pred_check_branch
      %21 = sbr.rel (0) target = $region21
    $region20: #{tpu_custom_call.1} parent=1 // pred_region
      _
    $region21: #{tpu_custom_call.1} parent=1 // pred_fallthru
      _
    %v22 = vld [vmem:[%s1] sm:$0xff]
    %v23 = vld [vmem:[%s1 + $0x8] sm:$0xff]
    %v24 = vld [vmem:[%s1 + $0x10] sm:$0xff]
    %v25 = vld [vmem:[%s1 + $0x18] sm:$0xff]
    %v26 = vld [vmem:[%s1 + $0x20] sm:$0xff]
    %v27 = vld [vmem:[%s1 + $0x28] sm:$0xff]
    %v28 = vld [vmem:[%s1 + $0x30] sm:$0xff]
    %v29 = vld [vmem:[%s1 + $0x38] sm:$0xff]
    %v30 = vld [vmem:[%s1 + $0x40] sm:$0xff]
    %v31 = vld [vmem:[%s1 + $0x48] sm:$0xff]
    %v32 = vld [vmem:[%s1 + $0x50] sm:$0xff]
    %v33 = vld [vmem:[%s1 + $0x58] sm:$0xff]
    %v34 = vld [vmem:[%s1 + $0x60] sm:$0xff]
    %v35 = vld [vmem:[%s1 + $0x68] sm:$0xff]
    %v36 = vld [vmem:[%s1 + $0x70] sm:$0xff]
    %v37 = vld [vmem:[%s1 + $0x78] sm:$0xff]
    %v38 = vld [vmem:[%s1 + $0x80] sm:$0xff]
    %v39 = vld [vmem:[%s1 + $0x88] sm:$0xff]
    %v40 = vld [vmem:[%s1 + $0x90] sm:$0xff]
    %v41 = vld [vmem:[%s1 + $0x98] sm:$0xff]
    %v42 = vld [vmem:[%s1 + $0xa0] sm:$0xff]
    %v43 = vld [vmem:[%s1 + $0xa8] sm:$0xff]
    %v44 = vld [vmem:[%s1 + $0xb0] sm:$0xff]
    %v45 = vld [vmem:[%s1 + $0xb8] sm:$0xff]
    %v46 = vld [vmem:[%s1 + $0xc0] sm:$0xff]
    %v47 = vld [vmem:[%s1 + $0xc8] sm:$0xff]
    %v48 = vld [vmem:[%s1 + $0xd0] sm:$0xff]
    %v49 = vld [vmem:[%s1 + $0xd8] sm:$0xff]
    %v50 = vld [vmem:[%s1 + $0xe0] sm:$0xff]
    %v51 = vld [vmem:[%s1 + $0xe8] sm:$0xff]
    %v52 = vld [vmem:[%s1 + $0xf0] sm:$0xff]
    %v53 = vld [vmem:[%s1 + $0xf8] sm:$0xff]
    %v54 = vld [vmem:[%s1 + $0x100] sm:$0xff]
    %v55 = vld [vmem:[%s1 + $0x108] sm:$0xff]
    %v56 = vld [vmem:[%s1 + $0x110] sm:$0xff]
    %v57 = vld [vmem:[%s1 + $0x118] sm:$0xff]
    %v58 = vld [vmem:[%s1 + $0x120] sm:$0xff]
    %v59 = vld [vmem:[%s1 + $0x128] sm:$0xff]
    %v60 = vld [vmem:[%s1 + $0x130] sm:$0xff]
    %v61 = vld [vmem:[%s1 + $0x138] sm:$0xff]
    %v62 = vld [vmem:[%s1 + $0x140] sm:$0xff]
    %v63 = vld [vmem:[%s1 + $0x148] sm:$0xff]
    %v64 = vld [vmem:[%s1 + $0x150] sm:$0xff]
    %v65 = vld [vmem:[%s1 + $0x158] sm:$0xff]
    %v66 = vld [vmem:[%s1 + $0x160] sm:$0xff]
    %v67 = vld [vmem:[%s1 + $0x168] sm:$0xff]
    %v68 = vld [vmem:[%s1 + $0x170] sm:$0xff]
    %v69 = vld [vmem:[%s1 + $0x178] sm:$0xff]
    %v70 = vld [vmem:[%s1 + $0x180] sm:$0xff]
    %v71 = vld [vmem:[%s1 + $0x188] sm:$0xff]
    %v72 = vld [vmem:[%s1 + $0x190] sm:$0xff]
    %v73 = vld [vmem:[%s1 + $0x198] sm:$0xff]
    %v74 = vld [vmem:[%s1 + $0x1a0] sm:$0xff]
    %v75 = vld [vmem:[%s1 + $0x1a8] sm:$0xff]
    %v76 = vld [vmem:[%s1 + $0x1b0] sm:$0xff]
    %v77 = vld [vmem:[%s1 + $0x1b8] sm:$0xff]
    %v78 = vld [vmem:[%s1 + $0x1c0] sm:$0xff]
    %v79 = vld [vmem:[%s1 + $0x1c8] sm:$0xff]
    %v80 = vld [vmem:[%s1 + $0x1d0] sm:$0xff]
    %v81 = vld [vmem:[%s1 + $0x1d8] sm:$0xff]
    %v82 = vld [vmem:[%s1 + $0x1e0] sm:$0xff]
    %v83 = vld [vmem:[%s1 + $0x1e8] sm:$0xff]
    %v84 = vld [vmem:[%s1 + $0x1f0] sm:$0xff]
    %v85 = vld [vmem:[%s1 + $0x1f8] sm:$0xff]
    %v86 = vld [vmem:[%s1 + $0x200] sm:$0xff]
    %v87 = vld [vmem:[%s1 + $0x208] sm:$0xff]
    %v88 = vld [vmem:[%s1 + $0x210] sm:$0xff]
    %v89 = vld [vmem:[%s1 + $0x218] sm:$0xff]
    %v90 = vld [vmem:[%s1 + $0x220] sm:$0xff]
    %v91 = vld [vmem:[%s1 + $0x228] sm:$0xff]
    %v92 = vld [vmem:[%s1 + $0x230] sm:$0xff]
    %v93 = vld [vmem:[%s1 + $0x238] sm:$0xff]
    %v94 = vld [vmem:[%s1 + $0x240] sm:$0xff]
    %v95 = vld [vmem:[%s1 + $0x248] sm:$0xff]
    %v96 = vld [vmem:[%s1 + $0x250] sm:$0xff]
    %v97 = vld [vmem:[%s1 + $0x258] sm:$0xff]
    %v98 = vld [vmem:[%s1 + $0x260] sm:$0xff]
    %v99 = vld [vmem:[%s1 + $0x268] sm:$0xff]
    %v100 = vld [vmem:[%s1 + $0x270] sm:$0xff]
    %v101 = vld [vmem:[%s1 + $0x278] sm:$0xff]
    %v102 = vld [vmem:[%s1 + $0x280] sm:$0xff]
    %v103 = vld [vmem:[%s1 + $0x288] sm:$0xff]
    %v104 = vld [vmem:[%s1 + $0x290] sm:$0xff]
    %v105 = vld [vmem:[%s1 + $0x298] sm:$0xff]
    %v106 = vld [vmem:[%s1 + $0x2a0] sm:$0xff]
    %v107 = vld [vmem:[%s1 + $0x2a8] sm:$0xff]
    %v108 = vld [vmem:[%s1 + $0x2b0] sm:$0xff]
    %v109 = vld [vmem:[%s1 + $0x2b8] sm:$0xff]
    %v110 = vld [vmem:[%s1 + $0x2c0] sm:$0xff]
    %v111 = vld [vmem:[%s1 + $0x2c8] sm:$0xff]
    %v112 = vld [vmem:[%s1 + $0x2d0] sm:$0xff]
    %v113 = vld [vmem:[%s1 + $0x2d8] sm:$0xff]
    %v114 = vld [vmem:[%s1 + $0x2e0] sm:$0xff]
    %v115 = vld [vmem:[%s1 + $0x2e8] sm:$0xff]
    %v116 = vld [vmem:[%s1 + $0x2f0] sm:$0xff]
    %v117 = vld [vmem:[%s1 + $0x2f8] sm:$0xff]
    %v118 = vld [vmem:[%s0] sm:$0x1]
    %v119 = vld [vmem:[%s2] sm:$0x3f]
    %v121 = vperm.slane %v119, 0
    %v122 = vperm.slane %v119, 1
    %v123 = vperm.slane %v119, 2
    %v124 = vperm.slane %v119, 3
    %v125 = vperm.slane %v119, 4
    %v126 = vperm.slane %v119, 5
    %133 = vmatpush.msra.mxu0 %v112
    %134 = vmatpush.msra.mxu0 %v106
    %135 = vmatpush.msra.mxu0 %v100
    %136 = vmatpush.msra.mxu0 %v94
    %137 = vmatpush.msra.mxu0 %v88
    %138 = vmatpush.msra.mxu0 %v82
    %139 = vmatpush.msra.mxu0 %v76
    %140 = vmatpush.msra.mxu0 %v70
    %141 = vmatpush.msra.mxu0 %v64
    %142 = vmatpush.msra.mxu0 %v58
    %143 = vmatpush.msra.mxu0 %v52
    %144 = vmatpush.msra.mxu0 %v46
    %145 = vmatpush.msra.mxu0 %v40
    %146 = vmatpush.msra.mxu0 %v34
    %147 = vmatpush.msra.mxu0 %v28
    %148 = vmatpush.msra.mxu0 %v22
    %149 = vmatmul.f32.gmra.mxu0 %v118
    %v150 = vpop.f32.mrf.mxu0
    %v151 = vadd.f32 %v121, %v150
    %152 = vdwg.mxu0
    %153 = vmatpush.msra.mxu0 %v113
    %154 = vmatpush.msra.mxu0 %v107
    %155 = vmatpush.msra.mxu0 %v101
    %156 = vmatpush.msra.mxu0 %v95
    %157 = vmatpush.msra.mxu0 %v89
    %158 = vmatpush.msra.mxu0 %v83
    %159 = vmatpush.msra.mxu0 %v77
    %160 = vmatpush.msra.mxu0 %v71
    %161 = vmatpush.msra.mxu0 %v65
    %162 = vmatpush.msra.mxu0 %v59
    %163 = vmatpush.msra.mxu0 %v53
    %164 = vmatpush.msra.mxu0 %v47
    %165 = vmatpush.msra.mxu0 %v41
    %166 = vmatpush.msra.mxu0 %v35
    %167 = vmatpush.msra.mxu0 %v29
    %168 = vmatpush.msra.mxu0 %v23
    %169 = vmatmul.f32.gmra.mxu0 %v118
    %v170 = vpop.f32.mrf.mxu0
    %v171 = vadd.f32 %v122, %v170
    %172 = vdwg.mxu0
    %173 = vmatpush.msra.mxu0 %v114
    %174 = vmatpush.msra.mxu0 %v108
    %175 = vmatpush.msra.mxu0 %v102
    %176 = vmatpush.msra.mxu0 %v96
    %177 = vmatpush.msra.mxu0 %v90
    %178 = vmatpush.msra.mxu0 %v84
    %179 = vmatpush.msra.mxu0 %v78
    %180 = vmatpush.msra.mxu0 %v72
    %181 = vmatpush.msra.mxu0 %v66
    %182 = vmatpush.msra.mxu0 %v60
    %183 = vmatpush.msra.mxu0 %v54
    %184 = vmatpush.msra.mxu0 %v48
    %185 = vmatpush.msra.mxu0 %v42
    %186 = vmatpush.msra.mxu0 %v36
    %187 = vmatpush.msra.mxu0 %v30
    %188 = vmatpush.msra.mxu0 %v24
    %189 = vmatmul.f32.gmra.mxu0 %v118
    %v190 = vpop.f32.mrf.mxu0
    %v191 = vadd.f32 %v123, %v190
    %192 = vdwg.mxu0
    %193 = vmatpush.msra.mxu0 %v115
    %194 = vmatpush.msra.mxu0 %v109
    %195 = vmatpush.msra.mxu0 %v103
    %196 = vmatpush.msra.mxu0 %v97
    %197 = vmatpush.msra.mxu0 %v91
    %198 = vmatpush.msra.mxu0 %v85
    %199 = vmatpush.msra.mxu0 %v79
    %200 = vmatpush.msra.mxu0 %v73
    %201 = vmatpush.msra.mxu0 %v67
    %202 = vmatpush.msra.mxu0 %v61
    %203 = vmatpush.msra.mxu0 %v55
    %204 = vmatpush.msra.mxu0 %v49
    %205 = vmatpush.msra.mxu0 %v43
    %206 = vmatpush.msra.mxu0 %v37
    %207 = vmatpush.msra.mxu0 %v31
    %208 = vmatpush.msra.mxu0 %v25
    %209 = vmatmul.f32.gmra.mxu0 %v118
    %v210 = vpop.f32.mrf.mxu0
    %v211 = vadd.f32 %v124, %v210
    %212 = vdwg.mxu0
    %213 = vmatpush.msra.mxu0 %v116
    %214 = vmatpush.msra.mxu0 %v110
    %215 = vmatpush.msra.mxu0 %v104
    %216 = vmatpush.msra.mxu0 %v98
    %217 = vmatpush.msra.mxu0 %v92
    %218 = vmatpush.msra.mxu0 %v86
    %219 = vmatpush.msra.mxu0 %v80
    %220 = vmatpush.msra.mxu0 %v74
    %221 = vmatpush.msra.mxu0 %v68
    %222 = vmatpush.msra.mxu0 %v62
    %223 = vmatpush.msra.mxu0 %v56
    %224 = vmatpush.msra.mxu0 %v50
    %225 = vmatpush.msra.mxu0 %v44
    %226 = vmatpush.msra.mxu0 %v38
    %227 = vmatpush.msra.mxu0 %v32
    %228 = vmatpush.msra.mxu0 %v26
    %229 = vmatmul.f32.gmra.mxu0 %v118
    %v230 = vpop.f32.mrf.mxu0
    %v231 = vadd.f32 %v125, %v230
    %232 = vdwg.mxu0
    %233 = vmatpush.msra.mxu0 %v117
    %234 = vmatpush.msra.mxu0 %v111
    %235 = vmatpush.msra.mxu0 %v105
    %236 = vmatpush.msra.mxu0 %v99
    %237 = vmatpush.msra.mxu0 %v93
    %238 = vmatpush.msra.mxu0 %v87
    %239 = vmatpush.msra.mxu0 %v81
    %240 = vmatpush.msra.mxu0 %v75
    %241 = vmatpush.msra.mxu0 %v69
    %242 = vmatpush.msra.mxu0 %v63
    %243 = vmatpush.msra.mxu0 %v57
    %244 = vmatpush.msra.mxu0 %v51
    %245 = vmatpush.msra.mxu0 %v45
    %246 = vmatpush.msra.mxu0 %v39
    %247 = vmatpush.msra.mxu0 %v33
    %248 = vmatpush.msra.mxu0 %v27
    %249 = vmatmul.f32.gmra.mxu0 %v118
    %v250 = vpop.f32.mrf.mxu0
    %v251 = vadd.f32 %v126, %v250
    %252 = vdwg.mxu0
    %v253 = vmax.f32 %v151, 0.0
    %v254 = vmax.f32 %v171, 0.0
    %v255 = vmax.f32 %v191, 0.0
    %v256 = vmax.f32 %v211, 0.0
    %v257 = vmax.f32 %v231, 0.0
    %v258 = vmax.f32 %v251, 0.0
    %v259 = vld [vmem:[%s3] sm:$0xff]
    %v260 = vld [vmem:[%s3 + $0x8] sm:$0xff]
    %v261 = vld [vmem:[%s3 + $0x10] sm:$0xff]
    %v262 = vld [vmem:[%s3 + $0x18] sm:$0xff]
    %v263 = vld [vmem:[%s3 + $0x20] sm:$0xff]
    %v264 = vld [vmem:[%s3 + $0x28] sm:$0xff]
    %v265 = vld [vmem:[%s3 + $0x30] sm:$0xff]
    %v266 = vld [vmem:[%s3 + $0x38] sm:$0xff]
    %v267 = vld [vmem:[%s3 + $0x40] sm:$0xff]
    %v268 = vld [vmem:[%s3 + $0x48] sm:$0xff]
    %v269 = vld [vmem:[%s3 + $0x50] sm:$0xff]
    %v270 = vld [vmem:[%s3 + $0x58] sm:$0xff]
    %v271 = vld [vmem:[%s3 + $0x60] sm:$0xff]
    %v272 = vld [vmem:[%s3 + $0x68] sm:$0xff]
    %v273 = vld [vmem:[%s3 + $0x70] sm:$0xff]
    %v274 = vld [vmem:[%s3 + $0x78] sm:$0xff]
    %v275 = vld [vmem:[%s3 + $0x80] sm:$0xff]
    %v276 = vld [vmem:[%s3 + $0x88] sm:$0xff]
    %v277 = vld [vmem:[%s3 + $0x90] sm:$0xff]
    %v278 = vld [vmem:[%s3 + $0x98] sm:$0xff]
    %v279 = vld [vmem:[%s3 + $0xa0] sm:$0xff]
    %v280 = vld [vmem:[%s3 + $0xa8] sm:$0xff]
    %v281 = vld [vmem:[%s3 + $0xb0] sm:$0xff]
    %v282 = vld [vmem:[%s3 + $0xb8] sm:$0xff]
    %v283 = vld [vmem:[%s3 + $0xc0] sm:$0xff]
    %v284 = vld [vmem:[%s3 + $0xc8] sm:$0xff]
    %v285 = vld [vmem:[%s3 + $0xd0] sm:$0xff]
    %v286 = vld [vmem:[%s3 + $0xd8] sm:$0xff]
    %v287 = vld [vmem:[%s3 + $0xe0] sm:$0xff]
    %v288 = vld [vmem:[%s3 + $0xe8] sm:$0xff]
    %v289 = vld [vmem:[%s3 + $0xf0] sm:$0xff]
    %v290 = vld [vmem:[%s3 + $0xf8] sm:$0xff]
    %v291 = vld [vmem:[%s3 + $0x100] sm:$0xff]
    %v292 = vld [vmem:[%s3 + $0x108] sm:$0xff]
    %v293 = vld [vmem:[%s3 + $0x110] sm:$0xff]
    %v294 = vld [vmem:[%s3 + $0x118] sm:$0xff]
    %v295 = vld [vmem:[%s3 + $0x120] sm:$0xff]
    %v296 = vld [vmem:[%s3 + $0x128] sm:$0xff]
    %v297 = vld [vmem:[%s3 + $0x130] sm:$0xff]
    %v298 = vld [vmem:[%s3 + $0x138] sm:$0xff]
    %v299 = vld [vmem:[%s3 + $0x140] sm:$0xff]
    %v300 = vld [vmem:[%s3 + $0x148] sm:$0xff]
    %v301 = vld [vmem:[%s3 + $0x150] sm:$0xff]
    %v302 = vld [vmem:[%s3 + $0x158] sm:$0xff]
    %v303 = vld [vmem:[%s3 + $0x160] sm:$0xff]
    %v304 = vld [vmem:[%s3 + $0x168] sm:$0xff]
    %v305 = vld [vmem:[%s3 + $0x170] sm:$0xff]
    %v306 = vld [vmem:[%s3 + $0x178] sm:$0xff]
    %v307 = vld [vmem:[%s3 + $0x180] sm:$0xff]
    %v308 = vld [vmem:[%s3 + $0x188] sm:$0xff]
    %v309 = vld [vmem:[%s3 + $0x190] sm:$0xff]
    %v310 = vld [vmem:[%s3 + $0x198] sm:$0xff]
    %v311 = vld [vmem:[%s3 + $0x1a0] sm:$0xff]
    %v312 = vld [vmem:[%s3 + $0x1a8] sm:$0xff]
    %v313 = vld [vmem:[%s3 + $0x1b0] sm:$0xff]
    %v314 = vld [vmem:[%s3 + $0x1b8] sm:$0xff]
    %v315 = vld [vmem:[%s3 + $0x1c0] sm:$0xff]
    %v316 = vld [vmem:[%s3 + $0x1c8] sm:$0xff]
    %v317 = vld [vmem:[%s3 + $0x1d0] sm:$0xff]
    %v318 = vld [vmem:[%s3 + $0x1d8] sm:$0xff]
    %v319 = vld [vmem:[%s3 + $0x1e0] sm:$0xff]
    %v320 = vld [vmem:[%s3 + $0x1e8] sm:$0xff]
    %v321 = vld [vmem:[%s3 + $0x1f0] sm:$0xff]
    %v322 = vld [vmem:[%s3 + $0x1f8] sm:$0xff]
    %v323 = vld [vmem:[%s3 + $0x200] sm:$0xff]
    %v324 = vld [vmem:[%s3 + $0x208] sm:$0xff]
    %v325 = vld [vmem:[%s3 + $0x210] sm:$0xff]
    %v326 = vld [vmem:[%s3 + $0x218] sm:$0xff]
    %v327 = vld [vmem:[%s3 + $0x220] sm:$0xff]
    %v328 = vld [vmem:[%s3 + $0x228] sm:$0xff]
    %v329 = vld [vmem:[%s3 + $0x230] sm:$0xff]
    %v330 = vld [vmem:[%s3 + $0x238] sm:$0xff]
    %v331 = vld [vmem:[%s3 + $0x240] sm:$0xff]
    %v332 = vld [vmem:[%s3 + $0x248] sm:$0xff]
    %v333 = vld [vmem:[%s3 + $0x250] sm:$0xff]
    %v334 = vld [vmem:[%s3 + $0x258] sm:$0xff]
    %v335 = vld [vmem:[%s3 + $0x260] sm:$0xff]
    %v336 = vld [vmem:[%s3 + $0x268] sm:$0xff]
    %v337 = vld [vmem:[%s3 + $0x270] sm:$0xff]
    %v338 = vld [vmem:[%s3 + $0x278] sm:$0xff]
    %v339 = vld [vmem:[%s3 + $0x280] sm:$0xff]
    %v340 = vld [vmem:[%s3 + $0x288] sm:$0xff]
    %v341 = vld [vmem:[%s3 + $0x290] sm:$0xff]
    %v342 = vld [vmem:[%s3 + $0x298] sm:$0xff]
    %v343 = vld [vmem:[%s3 + $0x2a0] sm:$0xff]
    %v344 = vld [vmem:[%s3 + $0x2a8] sm:$0xff]
    %v345 = vld [vmem:[%s3 + $0x2b0] sm:$0xff]
    %v346 = vld [vmem:[%s3 + $0x2b8] sm:$0xff]
    %v347 = vld [vmem:[%s3 + $0x2c0] sm:$0xff]
    %v348 = vld [vmem:[%s3 + $0x2c8] sm:$0xff]
    %v349 = vld [vmem:[%s3 + $0x2d0] sm:$0xff]
    %v350 = vld [vmem:[%s3 + $0x2d8] sm:$0xff]
    %v351 = vld [vmem:[%s3 + $0x2e0] sm:$0xff]
    %v352 = vld [vmem:[%s3 + $0x2e8] sm:$0xff]
    %v353 = vld [vmem:[%s3 + $0x2f0] sm:$0xff]
    %v354 = vld [vmem:[%s3 + $0x2f8] sm:$0xff]
    %s355 = sld [smem:[#allocation2]]
    %v356 = vstv %s355
    %357 = vmatpush.msra.mxu0 %v274
    %358 = vmatpush.msra.mxu0 %v273
    %359 = vmatpush.msra.mxu0 %v272
    %360 = vmatpush.msra.mxu0 %v271
    %361 = vmatpush.msra.mxu0 %v270
    %362 = vmatpush.msra.mxu0 %v269
    %363 = vmatpush.msra.mxu0 %v268
    %364 = vmatpush.msra.mxu0 %v267
    %365 = vmatpush.msra.mxu0 %v266
    %366 = vmatpush.msra.mxu0 %v265
    %367 = vmatpush.msra.mxu0 %v264
    %368 = vmatpush.msra.mxu0 %v263
    %369 = vmatpush.msra.mxu0 %v262
    %370 = vmatpush.msra.mxu0 %v261
    %371 = vmatpush.msra.mxu0 %v260
    %372 = vmatpush.msra.mxu0 %v259
    %373 = vmatmul.f32.gmra.mxu0 %v253
    %v374 = vpop.f32.mrf.mxu0
    %v375 = vadd.f32 %v356, %v374
    %376 = vdwg.mxu0
    %377 = vmatpush.msra.mxu0 %v290
    %378 = vmatpush.msra.mxu0 %v289
    %379 = vmatpush.msra.mxu0 %v288
    %380 = vmatpush.msra.mxu0 %v287
    %381 = vmatpush.msra.mxu0 %v286
    %382 = vmatpush.msra.mxu0 %v285
    %383 = vmatpush.msra.mxu0 %v284
    %384 = vmatpush.msra.mxu0 %v283
    %385 = vmatpush.msra.mxu0 %v282
    %386 = vmatpush.msra.mxu0 %v281
    %387 = vmatpush.msra.mxu0 %v280
    %388 = vmatpush.msra.mxu0 %v279
    %389 = vmatpush.msra.mxu0 %v278
    %390 = vmatpush.msra.mxu0 %v277
    %391 = vmatpush.msra.mxu0 %v276
    %392 = vmatpush.msra.mxu0 %v275
    %393 = vmatmul.f32.gmra.mxu0 %v254
    %v394 = vpop.f32.mrf.mxu0
    %v395 = vadd.f32 %v375, %v394
    %396 = vdwg.mxu0
    %397 = vmatpush.msra.mxu0 %v306
    %398 = vmatpush.msra.mxu0 %v305
    %399 = vmatpush.msra.mxu0 %v304
    %400 = vmatpush.msra.mxu0 %v303
    %401 = vmatpush.msra.mxu0 %v302
    %402 = vmatpush.msra.mxu0 %v301
    %403 = vmatpush.msra.mxu0 %v300
    %404 = vmatpush.msra.mxu0 %v299
    %405 = vmatpush.msra.mxu0 %v298
    %406 = vmatpush.msra.mxu0 %v297
    %407 = vmatpush.msra.mxu0 %v296
    %408 = vmatpush.msra.mxu0 %v295
    %409 = vmatpush.msra.mxu0 %v294
    %410 = vmatpush.msra.mxu0 %v293
    %411 = vmatpush.msra.mxu0 %v292
    %412 = vmatpush.msra.mxu0 %v291
    %413 = vmatmul.f32.gmra.mxu0 %v255
    %v414 = vpop.f32.mrf.mxu0
    %v415 = vadd.f32 %v395, %v414
    %416 = vdwg.mxu0
    %417 = vmatpush.msra.mxu0 %v322
    %418 = vmatpush.msra.mxu0 %v321
    %419 = vmatpush.msra.mxu0 %v320
    %420 = vmatpush.msra.mxu0 %v319
    %421 = vmatpush.msra.mxu0 %v318
    %422 = vmatpush.msra.mxu0 %v317
    %423 = vmatpush.msra.mxu0 %v316
    %424 = vmatpush.msra.mxu0 %v315
    %425 = vmatpush.msra.mxu0 %v314
    %426 = vmatpush.msra.mxu0 %v313
    %427 = vmatpush.msra.mxu0 %v312
    %428 = vmatpush.msra.mxu0 %v311
    %429 = vmatpush.msra.mxu0 %v310
    %430 = vmatpush.msra.mxu0 %v309
    %431 = vmatpush.msra.mxu0 %v308
    %432 = vmatpush.msra.mxu0 %v307
    %433 = vmatmul.f32.gmra.mxu0 %v256
    %v434 = vpop.f32.mrf.mxu0
    %v435 = vadd.f32 %v415, %v434
    %436 = vdwg.mxu0
    %437 = vmatpush.msra.mxu0 %v338
    %438 = vmatpush.msra.mxu0 %v337
    %439 = vmatpush.msra.mxu0 %v336
    %440 = vmatpush.msra.mxu0 %v335
    %441 = vmatpush.msra.mxu0 %v334
    %442 = vmatpush.msra.mxu0 %v333
    %443 = vmatpush.msra.mxu0 %v332
    %444 = vmatpush.msra.mxu0 %v331
    %445 = vmatpush.msra.mxu0 %v330
    %446 = vmatpush.msra.mxu0 %v329
    %447 = vmatpush.msra.mxu0 %v328
    %448 = vmatpush.msra.mxu0 %v327
    %449 = vmatpush.msra.mxu0 %v326
    %450 = vmatpush.msra.mxu0 %v325
    %451 = vmatpush.msra.mxu0 %v324
    %452 = vmatpush.msra.mxu0 %v323
    %453 = vmatmul.f32.gmra.mxu0 %v257
    %v454 = vpop.f32.mrf.mxu0
    %v455 = vadd.f32 %v435, %v454
    %456 = vdwg.mxu0
    %457 = vmatpush.msra.mxu0 %v354
    %458 = vmatpush.msra.mxu0 %v353
    %459 = vmatpush.msra.mxu0 %v352
    %460 = vmatpush.msra.mxu0 %v351
    %461 = vmatpush.msra.mxu0 %v350
    %462 = vmatpush.msra.mxu0 %v349
    %463 = vmatpush.msra.mxu0 %v348
    %464 = vmatpush.msra.mxu0 %v347
    %465 = vmatpush.msra.mxu0 %v346
    %466 = vmatpush.msra.mxu0 %v345
    %467 = vmatpush.msra.mxu0 %v344
    %468 = vmatpush.msra.mxu0 %v343
    %469 = vmatpush.msra.mxu0 %v342
    %470 = vmatpush.msra.mxu0 %v341
    %471 = vmatpush.msra.mxu0 %v340
    %472 = vmatpush.msra.mxu0 %v339
    %473 = vmatmul.f32.gmra.mxu0 %v258
    %v474 = vpop.f32.mrf.mxu0
    %v475 = vadd.f32 %v455, %v474
    %476 = vdwg.mxu0
    %vm477 = vcmask 57344
    %478 = vst.msk [vmem:[#allocation3] sm:$0x1] %vm477, %v475
    // Predicated region
    $region22: #{tpu_custom_call.1} parent=1 // pred_check
      _
    $region23: #{tpu_custom_call.1} parent=1 // pred_check_branch
      %480 = sbr.rel (0) target = $region25
    $region24: #{tpu_custom_call.1} parent=1 // pred_region
      %482 = vsyncadd [#allocation4], 0
      %s484 = sshll.u32 [#allocation3], 4
      %s485 = int_to_ptr.vmem [resolvable:$true] %s484
      %s486 = sshll.u32 %s5, 4
      %s487 = int_to_ptr.hbm [resolvable:$true] %s486
      %489 = dma.vmem_to_hbm [thread:$0]  %s485, 16, %s487, [#allocation4]
    $region25: #{tpu_custom_call.1} parent=1 // pred_fallthru
      _
    // Predicated region
    $region26: #{tpu_custom_call.1} parent=1 // pred_check
      _
    $region27: #{tpu_custom_call.1} parent=1 // pred_check_branch
      %491 = sbr.rel (0) target = $region29
    $region28: #{tpu_custom_call.1} parent=1 // pred_region
      %493 = dma.done [#allocation4], 16
    $region29: #{tpu_custom_call.1} parent=1 // pred_fallthru
      _
    %494 = vsyncpa [#allocation4], 1

</llo_original>
